<compile_context>
chip_gen: v6e
topology: v6e:2x2x1
jax: 0.10.0
libtpu: 0.0.40
codegen_flags: <defaults>
</compile_context>

<pallas_src>
import functools

import jax
import jax.numpy as jnp
from jax import lax
from jax.experimental import pallas as pl
from jax.experimental.pallas import tpu as pltpu


def _textcnn_kernel(ids_ref, tbl_ref, bias_ref, fcw_ref, fcb_ref, out_ref,
                    *, filter_sizes, S, B, F):
    V = tbl_ref.shape[0]

    # ---- fused embedding-lookup + all conv branches: ONE bf16 MXU matmul ----
    ids = ids_ref[...]                                          # [S*B, 1] int32
    vocab = lax.broadcasted_iota(jnp.int32, (S * B, V), 1)      # [S*B, V]
    one_hot = (vocab == ids).astype(jnp.bfloat16)               # exact 0/1
    big = jnp.dot(one_hot, tbl_ref[...],
                  preferred_element_type=jnp.float32)           # [S*B, sum(fs)*F] f32
    # Conv biases live only on each branch's k=0 column block, so the k-sum
    # below adds each bias exactly once per output position.
    big = big + bias_ref[...]                                   # [1, 72] broadcast

    fcw = fcw_ref[...]                                          # [nfs*F, O] f32
    logits = fcb_ref[...]                                       # [1, O] -> broadcast

    c0 = 0
    for i, fs in enumerate(filter_sizes):
        L = S - fs + 1                                          # valid positions
        # acc[(l*B + b), f] = bias_i[f] + sum_k big[((l+k)*B + b), c0 + k*F + f]
        acc = big[0:L * B, c0:c0 + F]
        for k in range(1, fs):
            acc = acc + big[k * B:(k + L) * B, c0 + k * F:c0 + (k + 1) * F]
        acc = jnp.maximum(acc, 0.0)                             # ReLU (f32 VPU)

        # max_pool1d over all L positions: tree reduction over position blocks
        # (overlapping halves when the count is odd; duplicates are harmless
        # for max).  Depth ceil(log2 L) instead of L-1.
        n = L
        while n > 1:
            h = (n + 1) // 2
            acc = jnp.maximum(acc[0:h * B, :], acc[(n - h) * B:n * B, :])
            n = h
        pooled = acc                                            # [B, F]

        # FC contribution of this branch (f32 MXU matmul, no concatenate).
        logits = logits + jnp.dot(pooled, fcw[i * F:(i + 1) * F, :],
                                  preferred_element_type=jnp.float32)
        c0 += fs * F

    # TODO(synk): training-mode dropout mask not implemented (identity at inference).

    # ---- LogSoftmax(dim=-1) -------------------------------------------------
    m = jnp.max(logits, axis=-1, keepdims=True)
    s = logits - m
    lse = jnp.log(jnp.sum(jnp.exp(s), axis=-1, keepdims=True))
    out_ref[...] = s - lse                                      # [B, O]


def cnn_forward(x, params, filter_sizes):
    # x: [seq_len, batch] int32 token ids (the PyTorch module permutes internally).
    S, B = x.shape
    V, E = params['embedding'].shape
    F = params[f'conv_w_{filter_sizes[0]}'].shape[-1]
    O = params['fc_w'].shape[1]

    # ---- weight prep (fold embedding into conv weights; do once offline) ----
    tbl_blocks, bias_blocks = [], []
    for fs in filter_sizes:
        w = params[f'conv_w_{fs}']                              # [fs, E, F]
        b = params[f'conv_b_{fs}']                              # [1, F]
        blk = jnp.einsum('ve,kef->vkf', params['embedding'], w) # [V, fs, F] f32
        tbl_blocks.append(blk.reshape(V, fs * F))
        bias_blocks.append(jnp.concatenate(
            [b, jnp.zeros((1, (fs - 1) * F), jnp.float32)], axis=1))
    folded_tbl = jnp.concatenate(tbl_blocks, axis=1).astype(jnp.bfloat16)  # [V, 72]
    bias_row = jnp.concatenate(bias_blocks, axis=1)                        # [1, 72]
    total_cols = folded_tbl.shape[1]

    # NOTE: for large vocabularies the one-hot [S*B, V] grows too big for VMEM
    # (esp. v7x's 64 MiB); switch the lookup to a scalar-prefetch row gather
    # (PrefetchScalarGridSpec + pl.Element index_map) in that regime.
    ids2d = x.reshape(S * B, 1)        # seq-major flatten (metadata-only op)

    kernel = functools.partial(_textcnn_kernel,
                               filter_sizes=tuple(filter_sizes),
                               S=S, B=B, F=F)
    vmem = pl.BlockSpec(memory_space=pltpu.MemorySpace.VMEM)

    flops = (2 * (S * B) * V * total_cols                       # fused lookup/conv
             + 2 * B * len(filter_sizes) * F * O)               # FC
    bytes_accessed = (ids2d.size * 4 + folded_tbl.size * 2 + bias_row.size * 4
                      + params['fc_w'].size * 4 + params['fc_b'].size * 4
                      + B * O * 4)
    return pl.pallas_call(
        kernel,
        out_shape=jax.ShapeDtypeStruct((B, O), jnp.float32),
        in_specs=[vmem] * 5,
        out_specs=vmem,
        cost_estimate=pl.CostEstimate(flops=flops,
                                      transcendentals=B * (O + 1),
                                      bytes_accessed=bytes_accessed),
    )(ids2d, folded_tbl, bias_row, params['fc_w'], params['fc_b'])


def ref_forward(x, params, filter_sizes):
    """Pure-JAX f32 reference (matches the PyTorch forward)."""
    xb = x.T
    emb = jnp.take(params['embedding'], xb, axis=0)             # [B, S, E]
    pooled = []
    for fs in filter_sizes:
        w, b = params[f'conv_w_{fs}'], params[f'conv_b_{fs}']
        L = emb.shape[1] - fs + 1
        acc = sum(jnp.einsum('ble,ef->blf', emb[:, k:k + L, :], w[k])
                  for k in range(fs)) + b
        pooled.append(jnp.max(jax.nn.relu(acc), axis=1))
    cat = jnp.concatenate(pooled, axis=1)
    logits = cat @ params['fc_w'] + params['fc_b']
    return jax.nn.log_softmax(logits, axis=-1)


if __name__ == "__main__":
    # Module hyperparameters (small, consistent with the PyTorch __init__).
    vocab_size = 50
    embedding_dim = 32
    n_filters = 8
    filter_sizes = (2, 3, 4)
    output_dim = 5
    # dropout = 0.5  (identity at inference)

    seq_len, batch = 12, 8

    key = jax.random.PRNGKey(0)
    ks = jax.random.split(key, 2 * len(filter_sizes) + 4)

    params = {}
    # nn.Embedding(vocab_size, embedding_dim) -> weight [V, E]
    params['embedding'] = 0.1 * jax.random.normal(
        ks[0], (vocab_size, embedding_dim), jnp.float32)
    # nn.Conv2d(1, n_filters, (fs, E)) -> PyTorch weight [F, 1, fs, E];
    # stored here pre-transposed as [fs, E, F] for the folded-table prep.
    for i, fs in enumerate(filter_sizes):
        params[f'conv_w_{fs}'] = 0.1 * jax.random.normal(
            ks[1 + 2 * i], (fs, embedding_dim, n_filters), jnp.float32)
        params[f'conv_b_{fs}'] = 0.1 * jax.random.normal(
            ks[2 + 2 * i], (1, n_filters), jnp.float32)
    # nn.Linear(len(fs)*F, output_dim) -> stored transposed as [C, O].
    c_total = len(filter_sizes) * n_filters
    params['fc_w'] = 0.1 * jax.random.normal(
        ks[-3], (c_total, output_dim), jnp.float32)
    params['fc_b'] = 0.1 * jax.random.normal(
        ks[-2], (1, output_dim), jnp.float32)

    # Input token ids: [seq_len, batch], matching the module's expected layout.
    x = jax.random.randint(ks[-1], (seq_len, batch), 0, vocab_size,
                           dtype=jnp.int32)

    out = cnn_forward(x, params, filter_sizes)
    out = jax.block_until_ready(out)

    ref = jax.block_until_ready(ref_forward(x, params, filter_sizes))
    assert out.shape == (batch, output_dim)
    # Tolerance accounts for bf16 MXU operands (folded table); accumulation is f32.
    assert jnp.allclose(out, ref, atol=5e-3, rtol=5e-3), "mismatch vs reference"

    print("KERNEL_OK")
</pallas_src>

<mosaic_0001>
module attributes {stable_mosaic.version = 11 : i64} {
  func.func @_textcnn_kernel(%arg0: memref<96x1xi32, #tpu.memory_space<vmem>>, %arg1: memref<50x72xbf16, #tpu.memory_space<vmem>>, %arg2: memref<1x72xf32, #tpu.memory_space<vmem>>, %arg3: memref<24x5xf32, #tpu.memory_space<vmem>>, %arg4: memref<1x5xf32, #tpu.memory_space<vmem>>, %arg5: memref<8x5xf32, #tpu.memory_space<vmem>>) attributes {dimension_semantics = [], scalar_prefetch = 0 : i64, scratch_operands = 0 : i64, tpu.core_type = #tpu.core_type<tc>} {
    %c0 = arith.constant 0 : index
    %c0_0 = arith.constant 0 : index
    %0 = vector.load %arg0[%c0, %c0_0] : memref<96x1xi32, #tpu.memory_space<vmem>>, vector<96x1xi32>
    %1 = tpu.iota {dimensions = array<i32: 1>} : vector<96x50xi32>
    %2 = vector.broadcast %0 : vector<96x1xi32> to vector<96x50xi32>
    %3 = arith.cmpi eq, %1, %2 : vector<96x50xi32>
    %4 = arith.extui %3 : vector<96x50xi1> to vector<96x50xi32>
    %5 = arith.sitofp %4 : vector<96x50xi32> to vector<96x50xf32>
    %6 = arith.truncf %5 : vector<96x50xf32> to vector<96x50xbf16>
    %c0_1 = arith.constant 0 : index
    %c0_2 = arith.constant 0 : index
    %7 = vector.load %arg1[%c0_1, %c0_2] : memref<50x72xbf16, #tpu.memory_space<vmem>>, vector<50x72xbf16>
    %cst = arith.constant dense<0.000000e+00> : vector<96x72xf32>
    %8 = tpu.matmul %6, %7, %cst {dimension_numbers = #tpu.dot_dimension_numbers<[1], [0], [0], [1], [0, 0, 1, 1], [], []>} : vector<96x50xbf16>, vector<50x72xbf16>, vector<96x72xf32> -> vector<96x72xf32>
    %c0_3 = arith.constant 0 : index
    %c0_4 = arith.constant 0 : index
    %9 = vector.load %arg2[%c0_3, %c0_4] : memref<1x72xf32, #tpu.memory_space<vmem>>, vector<1x72xf32>
    %10 = vector.broadcast %9 : vector<1x72xf32> to vector<96x72xf32>
    %11 = arith.addf %8, %10 : vector<96x72xf32>
    %c0_5 = arith.constant 0 : index
    %c0_6 = arith.constant 0 : index
    %12 = vector.load %arg3[%c0_5, %c0_6] : memref<24x5xf32, #tpu.memory_space<vmem>>, vector<24x5xf32>
    %c0_7 = arith.constant 0 : index
    %c0_8 = arith.constant 0 : index
    %13 = vector.load %arg4[%c0_7, %c0_8] : memref<1x5xf32, #tpu.memory_space<vmem>>, vector<1x5xf32>
    %14 = vector.extract_strided_slice %11 {offsets = [0, 0], sizes = [88, 8], strides = [1, 1]} : vector<96x72xf32> to vector<88x8xf32>
    %15 = vector.extract_strided_slice %11 {offsets = [8, 8], sizes = [88, 8], strides = [1, 1]} : vector<96x72xf32> to vector<88x8xf32>
    %16 = arith.addf %14, %15 : vector<88x8xf32>
    %cst_9 = arith.constant 0.000000e+00 : f32
    %17 = vector.broadcast %cst_9 : f32 to vector<88x8xf32>
    %18 = arith.maximumf %16, %17 : vector<88x8xf32>
    %19 = vector.extract_strided_slice %18 {offsets = [0, 0], sizes = [48, 8], strides = [1, 1]} : vector<88x8xf32> to vector<48x8xf32>
    %20 = vector.extract_strided_slice %18 {offsets = [40, 0], sizes = [48, 8], strides = [1, 1]} : vector<88x8xf32> to vector<48x8xf32>
    %21 = arith.maximumf %19, %20 : vector<48x8xf32>
    %22 = vector.extract_strided_slice %21 {offsets = [0, 0], sizes = [24, 8], strides = [1, 1]} : vector<48x8xf32> to vector<24x8xf32>
    %23 = vector.extract_strided_slice %21 {offsets = [24, 0], sizes = [24, 8], strides = [1, 1]} : vector<48x8xf32> to vector<24x8xf32>
    %24 = arith.maximumf %22, %23 : vector<24x8xf32>
    %25 = vector.extract_strided_slice %24 {offsets = [0, 0], sizes = [16, 8], strides = [1, 1]} : vector<24x8xf32> to vector<16x8xf32>
    %26 = vector.extract_strided_slice %24 {offsets = [8, 0], sizes = [16, 8], strides = [1, 1]} : vector<24x8xf32> to vector<16x8xf32>
    %27 = arith.maximumf %25, %26 : vector<16x8xf32>
    %28 = vector.extract_strided_slice %27 {offsets = [0, 0], sizes = [8, 8], strides = [1, 1]} : vector<16x8xf32> to vector<8x8xf32>
    %29 = vector.extract_strided_slice %27 {offsets = [8, 0], sizes = [8, 8], strides = [1, 1]} : vector<16x8xf32> to vector<8x8xf32>
    %30 = arith.maximumf %28, %29 : vector<8x8xf32>
    %31 = vector.extract_strided_slice %12 {offsets = [0, 0], sizes = [8, 5], strides = [1, 1]} : vector<24x5xf32> to vector<8x5xf32>
    %cst_10 = arith.constant dense<0.000000e+00> : vector<8x5xf32>
    %32 = tpu.matmul %30, %31, %cst_10 {dimension_numbers = #tpu.dot_dimension_numbers<[1], [0], [0], [1], [0, 0, 1, 1], [], []>} : vector<8x8xf32>, vector<8x5xf32>, vector<8x5xf32> -> vector<8x5xf32>
    %33 = vector.broadcast %13 : vector<1x5xf32> to vector<8x5xf32>
    %34 = arith.addf %33, %32 : vector<8x5xf32>
    %35 = vector.extract_strided_slice %11 {offsets = [0, 16], sizes = [80, 8], strides = [1, 1]} : vector<96x72xf32> to vector<80x8xf32>
    %36 = vector.extract_strided_slice %11 {offsets = [8, 24], sizes = [80, 8], strides = [1, 1]} : vector<96x72xf32> to vector<80x8xf32>
    %37 = arith.addf %35, %36 : vector<80x8xf32>
    %38 = vector.extract_strided_slice %11 {offsets = [16, 32], sizes = [80, 8], strides = [1, 1]} : vector<96x72xf32> to vector<80x8xf32>
    %39 = arith.addf %37, %38 : vector<80x8xf32>
    %cst_11 = arith.constant 0.000000e+00 : f32
    %40 = vector.broadcast %cst_11 : f32 to vector<80x8xf32>
    %41 = arith.maximumf %39, %40 : vector<80x8xf32>
    %42 = vector.extract_strided_slice %41 {offsets = [0, 0], sizes = [40, 8], strides = [1, 1]} : vector<80x8xf32> to vector<40x8xf32>
    %43 = vector.extract_strided_slice %41 {offsets = [40, 0], sizes = [40, 8], strides = [1, 1]} : vector<80x8xf32> to vector<40x8xf32>
    %44 = arith.maximumf %42, %43 : vector<40x8xf32>
    %45 = vector.extract_strided_slice %44 {offsets = [0, 0], sizes = [24, 8], strides = [1, 1]} : vector<40x8xf32> to vector<24x8xf32>
    %46 = vector.extract_strided_slice %44 {offsets = [16, 0], sizes = [24, 8], strides = [1, 1]} : vector<40x8xf32> to vector<24x8xf32>
    %47 = arith.maximumf %45, %46 : vector<24x8xf32>
    %48 = vector.extract_strided_slice %47 {offsets = [0, 0], sizes = [16, 8], strides = [1, 1]} : vector<24x8xf32> to vector<16x8xf32>
    %49 = vector.extract_strided_slice %47 {offsets = [8, 0], sizes = [16, 8], strides = [1, 1]} : vector<24x8xf32> to vector<16x8xf32>
    %50 = arith.maximumf %48, %49 : vector<16x8xf32>
    %51 = vector.extract_strided_slice %50 {offsets = [0, 0], sizes = [8, 8], strides = [1, 1]} : vector<16x8xf32> to vector<8x8xf32>
    %52 = vector.extract_strided_slice %50 {offsets = [8, 0], sizes = [8, 8], strides = [1, 1]} : vector<16x8xf32> to vector<8x8xf32>
    %53 = arith.maximumf %51, %52 : vector<8x8xf32>
    %54 = vector.extract_strided_slice %12 {offsets = [8, 0], sizes = [8, 5], strides = [1, 1]} : vector<24x5xf32> to vector<8x5xf32>
    %cst_12 = arith.constant dense<0.000000e+00> : vector<8x5xf32>
    %55 = tpu.matmul %53, %54, %cst_12 {dimension_numbers = #tpu.dot_dimension_numbers<[1], [0], [0], [1], [0, 0, 1, 1], [], []>} : vector<8x8xf32>, vector<8x5xf32>, vector<8x5xf32> -> vector<8x5xf32>
    %56 = arith.addf %34, %55 : vector<8x5xf32>
    %57 = vector.extract_strided_slice %11 {offsets = [0, 40], sizes = [72, 8], strides = [1, 1]} : vector<96x72xf32> to vector<72x8xf32>
    %58 = vector.extract_strided_slice %11 {offsets = [8, 48], sizes = [72, 8], strides = [1, 1]} : vector<96x72xf32> to vector<72x8xf32>
    %59 = arith.addf %57, %58 : vector<72x8xf32>
    %60 = vector.extract_strided_slice %11 {offsets = [16, 56], sizes = [72, 8], strides = [1, 1]} : vector<96x72xf32> to vector<72x8xf32>
    %61 = arith.addf %59, %60 : vector<72x8xf32>
    %62 = vector.extract_strided_slice %11 {offsets = [24, 64], sizes = [72, 8], strides = [1, 1]} : vector<96x72xf32> to vector<72x8xf32>
    %63 = arith.addf %61, %62 : vector<72x8xf32>
    %cst_13 = arith.constant 0.000000e+00 : f32
    %64 = vector.broadcast %cst_13 : f32 to vector<72x8xf32>
    %65 = arith.maximumf %63, %64 : vector<72x8xf32>
    %66 = vector.extract_strided_slice %65 {offsets = [0, 0], sizes = [40, 8], strides = [1, 1]} : vector<72x8xf32> to vector<40x8xf32>
    %67 = vector.extract_strided_slice %65 {offsets = [32, 0], sizes = [40, 8], strides = [1, 1]} : vector<72x8xf32> to vector<40x8xf32>
    %68 = arith.maximumf %66, %67 : vector<40x8xf32>
    %69 = vector.extract_strided_slice %68 {offsets = [0, 0], sizes = [24, 8], strides = [1, 1]} : vector<40x8xf32> to vector<24x8xf32>
    %70 = vector.extract_strided_slice %68 {offsets = [16, 0], sizes = [24, 8], strides = [1, 1]} : vector<40x8xf32> to vector<24x8xf32>
    %71 = arith.maximumf %69, %70 : vector<24x8xf32>
    %72 = vector.extract_strided_slice %71 {offsets = [0, 0], sizes = [16, 8], strides = [1, 1]} : vector<24x8xf32> to vector<16x8xf32>
    %73 = vector.extract_strided_slice %71 {offsets = [8, 0], sizes = [16, 8], strides = [1, 1]} : vector<24x8xf32> to vector<16x8xf32>
    %74 = arith.maximumf %72, %73 : vector<16x8xf32>
    %75 = vector.extract_strided_slice %74 {offsets = [0, 0], sizes = [8, 8], strides = [1, 1]} : vector<16x8xf32> to vector<8x8xf32>
    %76 = vector.extract_strided_slice %74 {offsets = [8, 0], sizes = [8, 8], strides = [1, 1]} : vector<16x8xf32> to vector<8x8xf32>
    %77 = arith.maximumf %75, %76 : vector<8x8xf32>
    %78 = vector.extract_strided_slice %12 {offsets = [16, 0], sizes = [8, 5], strides = [1, 1]} : vector<24x5xf32> to vector<8x5xf32>
    %cst_14 = arith.constant dense<0.000000e+00> : vector<8x5xf32>
    %79 = tpu.matmul %77, %78, %cst_14 {dimension_numbers = #tpu.dot_dimension_numbers<[1], [0], [0], [1], [0, 0, 1, 1], [], []>} : vector<8x8xf32>, vector<8x5xf32>, vector<8x5xf32> -> vector<8x5xf32>
    %80 = arith.addf %56, %79 : vector<8x5xf32>
    %cst_15 = arith.constant dense<0xFF800000> : vector<8xf32>
    %81 = vector.multi_reduction <maximumf>, %80, %cst_15 [1] : vector<8x5xf32> to vector<8xf32>
    %82 = vector.shape_cast %81 : vector<8xf32> to vector<8x1xf32>
    %83 = vector.broadcast %82 : vector<8x1xf32> to vector<8x5xf32>
    %84 = arith.subf %80, %83 : vector<8x5xf32>
    %85 = math.exp %84 : vector<8x5xf32>
    %cst_16 = arith.constant dense<0.000000e+00> : vector<8xf32>
    %86 = vector.multi_reduction <add>, %85, %cst_16 [1] : vector<8x5xf32> to vector<8xf32>
    %87 = vector.shape_cast %86 : vector<8xf32> to vector<8x1xf32>
    %88 = math.log %87 : vector<8x1xf32>
    %89 = vector.broadcast %88 : vector<8x1xf32> to vector<8x5xf32>
    %90 = arith.subf %84, %89 : vector<8x5xf32>
    %c0_17 = arith.constant 0 : index
    %c0_18 = arith.constant 0 : index
    %91 = vector.load %arg5[%c0_17, %c0_18] : memref<8x5xf32, #tpu.memory_space<vmem>>, vector<8x5xf32>
    tpu.vector_store %arg5[%c0_17, %c0_18], %90 {strides = array<i32>} : memref<8x5xf32, #tpu.memory_space<vmem>>, vector<8x5xf32>,
    return
  }
}

</mosaic_0001>

<llo_original>
// kernel: tpu_custom_call.1
$region0: #{tpu_custom_call.1}
  #allocation0 [shape = 'u32[]', space=smem, size = 0x4, offset = 0x4, fixed_abs, tag = 'smem constant byte address 0x4 - core index']
  #allocation1 [shape = 'u32[144,128]{1,0:T(1,128)}', space=vmem, size = 0x12000, scoped, tag = 'internal scratch']
  %s0 = inlined_call_operand.vmem [shape: s32[96,1], index: 0, kind: input, shape index: {}]
  %s1 = inlined_call_operand.vmem [shape: bf16[50,72], index: 1, kind: input, shape index: {}]
  %s2 = inlined_call_operand.vmem [shape: f32[1,72], index: 2, kind: input, shape index: {}]
  %s3 = inlined_call_operand.vmem [shape: f32[24,5], index: 3, kind: input, shape index: {}]
  %s4 = inlined_call_operand.vmem [shape: f32[1,5], index: 4, kind: input, shape index: {}]
  %s5 = inlined_call_operand.hbm [shape: f32[8,5], index: 5, kind: output, shape index: {}]
  %s6 = sld [smem:[#allocation0]]
  $region30: #{tpu_custom_call.1} parent=0
    _
  %s8 = ssub.s32 1, %s6
  %s9 = scalar_select 0, %s8, %s6
  $region1: #{tpu_custom_call.1} parent=0
    #allocation2 [shape = 'u8[4096]{0}', space=vmem, size = 0x1000, scoped, tag = 'output window, operand 0, single buffered']
    #allocation3 [shape = 's32[1]{0}', space=sflag, size = 0x4, scoped, tag = 'scoped memory for tpu_custom_call.1']
    %10 = vsyncpa [#allocation3], 0
    // Predicated region
    $region2: #{tpu_custom_call.1} parent=1 // pred_check
      _
    $region3: #{tpu_custom_call.1} parent=1 // pred_check_branch
      %12 = sbr.rel (0) target = $region5
    $region4: #{tpu_custom_call.1} parent=1 // pred_region
      _
    $region5: #{tpu_custom_call.1} parent=1 // pred_fallthru
      _
    // Predicated region
    $region6: #{tpu_custom_call.1} parent=1 // pred_check
      _
    $region7: #{tpu_custom_call.1} parent=1 // pred_check_branch
      %14 = sbr.rel (0) target = $region9
    $region8: #{tpu_custom_call.1} parent=1 // pred_region
      _
    $region9: #{tpu_custom_call.1} parent=1 // pred_fallthru
      _
    // Predicated region
    $region10: #{tpu_custom_call.1} parent=1 // pred_check
      _
    $region11: #{tpu_custom_call.1} parent=1 // pred_check_branch
      %16 = sbr.rel (0) target = $region13
    $region12: #{tpu_custom_call.1} parent=1 // pred_region
      _
    $region13: #{tpu_custom_call.1} parent=1 // pred_fallthru
      _
    // Predicated region
    $region14: #{tpu_custom_call.1} parent=1 // pred_check
      _
    $region15: #{tpu_custom_call.1} parent=1 // pred_check_branch
      %18 = sbr.rel (0) target = $region17
    $region16: #{tpu_custom_call.1} parent=1 // pred_region
      _
    $region17: #{tpu_custom_call.1} parent=1 // pred_fallthru
      _
    // Predicated region
    $region18: #{tpu_custom_call.1} parent=1 // pred_check
      _
    $region19: #{tpu_custom_call.1} parent=1 // pred_check_branch
      %20 = sbr.rel (0) target = $region21
    $region20: #{tpu_custom_call.1} parent=1 // pred_region
      _
    $region21: #{tpu_custom_call.1} parent=1 // pred_fallthru
      _
    %v22 = vld [vmem:[%s0] sm:$0xff]
    %v23 = vld [vmem:[%s0 + $0x8] sm:$0xff]
    %v24 = vld [vmem:[%s0 + $0x10] sm:$0xff]
    %v25 = vld [vmem:[%s0 + $0x18] sm:$0xff]
    %v26 = vld [vmem:[%s0 + $0x20] sm:$0xff]
    %v27 = vld [vmem:[%s0 + $0x28] sm:$0xff]
    %v28 = vld [vmem:[%s0 + $0x30] sm:$0xff]
    %v29 = vld [vmem:[%s0 + $0x38] sm:$0xff]
    %v30 = vld [vmem:[%s0 + $0x40] sm:$0xff]
    %v31 = vld [vmem:[%s0 + $0x48] sm:$0xff]
    %v32 = vld [vmem:[%s0 + $0x50] sm:$0xff]
    %v33 = vld [vmem:[%s0 + $0x58] sm:$0xff]
    %v34 = vlaneseq
    %v35 = vand.u32 %v34, 127
    %36 = vset.pattern.permute.xlu0 0
    %37 = vperm.xlu0 %36, %v22
    %v38 = vpop.permute.xlu0 %37
    %39 = vset.pattern.permute.xlu0 0
    %40 = vperm.xlu0 %39, %v23
    %v41 = vpop.permute.xlu0 %40
    %42 = vset.pattern.permute.xlu0 0
    %43 = vperm.xlu0 %42, %v24
    %v44 = vpop.permute.xlu0 %43
    %45 = vset.pattern.permute.xlu0 0
    %46 = vperm.xlu0 %45, %v25
    %v47 = vpop.permute.xlu0 %46
    %48 = vset.pattern.permute.xlu0 0
    %49 = vperm.xlu0 %48, %v26
    %v50 = vpop.permute.xlu0 %49
    %51 = vset.pattern.permute.xlu0 0
    %52 = vperm.xlu0 %51, %v27
    %v53 = vpop.permute.xlu0 %52
    %54 = vset.pattern.permute.xlu0 0
    %55 = vperm.xlu0 %54, %v28
    %v56 = vpop.permute.xlu0 %55
    %57 = vset.pattern.permute.xlu0 0
    %58 = vperm.xlu0 %57, %v29
    %v59 = vpop.permute.xlu0 %58
    %60 = vset.pattern.permute.xlu0 0
    %61 = vperm.xlu0 %60, %v30
    %v62 = vpop.permute.xlu0 %61
    %63 = vset.pattern.permute.xlu0 0
    %64 = vperm.xlu0 %63, %v31
    %v65 = vpop.permute.xlu0 %64
    %66 = vset.pattern.permute.xlu0 0
    %67 = vperm.xlu0 %66, %v32
    %v68 = vpop.permute.xlu0 %67
    %69 = vset.pattern.permute.xlu0 0
    %70 = vperm.xlu0 %69, %v33
    %v71 = vpop.permute.xlu0 %70
    %vm72 = vcmp.eq.s32.totalorder %v35, %v38
    %vm73 = vcmp.eq.s32.totalorder %v35, %v41
    %vm74 = vcmp.eq.s32.totalorder %v35, %v44
    %vm75 = vcmp.eq.s32.totalorder %v35, %v47
    %vm76 = vcmp.eq.s32.totalorder %v35, %v50
    %vm77 = vcmp.eq.s32.totalorder %v35, %v53
    %vm78 = vcmp.eq.s32.totalorder %v35, %v56
    %vm79 = vcmp.eq.s32.totalorder %v35, %v59
    %vm80 = vcmp.eq.s32.totalorder %v35, %v62
    %vm81 = vcmp.eq.s32.totalorder %v35, %v65
    %vm82 = vcmp.eq.s32.totalorder %v35, %v68
    %vm83 = vcmp.eq.s32.totalorder %v35, %v71
    %v84 = vsel %vm72, 1, 0
    %v85 = vsel %vm73, 1, 0
    %v86 = vsel %vm74, 1, 0
    %v87 = vsel %vm75, 1, 0
    %v88 = vsel %vm76, 1, 0
    %v89 = vsel %vm77, 1, 0
    %v90 = vsel %vm78, 1, 0
    %v91 = vsel %vm79, 1, 0
    %v92 = vsel %vm80, 1, 0
    %v93 = vsel %vm81, 1, 0
    %v94 = vsel %vm82, 1, 0
    %v95 = vsel %vm83, 1, 0
    %v96 = vcvt.s32.f32 %v84
    %v97 = vcvt.s32.f32 %v85
    %v98 = vcvt.s32.f32 %v86
    %v99 = vcvt.s32.f32 %v87
    %v100 = vcvt.s32.f32 %v88
    %v101 = vcvt.s32.f32 %v89
    %v102 = vcvt.s32.f32 %v90
    %v103 = vcvt.s32.f32 %v91
    %v104 = vcvt.s32.f32 %v92
    %v105 = vcvt.s32.f32 %v93
    %v106 = vcvt.s32.f32 %v94
    %v107 = vcvt.s32.f32 %v95
    %v108 = vpack.c.bf16 %v97, %v96
    %v109 = vpack.c.bf16 %v99, %v98
    %v110 = vpack.c.bf16 %v101, %v100
    %v111 = vpack.c.bf16 %v103, %v102
    %v112 = vpack.c.bf16 %v105, %v104
    %v113 = vpack.c.bf16 %v107, %v106
    %v114 = vld [vmem:[%s1] sm:$0xf]
    %v115 = vld [vmem:[%s1 + $0x4] sm:$0xf]
    %v116 = vld [vmem:[%s1 + $0x8] sm:$0xf]
    %v117 = vld [vmem:[%s1 + $0xc] sm:$0xf]
    %v118 = vld [vmem:[%s1 + $0x10] sm:$0xf]
    %v119 = vld [vmem:[%s1 + $0x14] sm:$0xf]
    %v120 = vld [vmem:[%s1 + $0x18] sm:$0x1]
    %v121 = vld [vmem:[%s2] sm:$0x1]
    %v123 = vlaneseq
    %v124 = vshrl.u32 %v123, 7
    %v125 = vsub.s32 0, %v124
    %v126 = vrot.slane %v121, %v125
    %v135 = vunpack.c.l.b16 %v114
    %v136 = vunpack.c.l.b16 %v115
    %v137 = vunpack.c.l.b16 %v116
    %v138 = vunpack.c.l.b16 %v117
    %v139 = vunpack.c.l.b16 %v118
    %v140 = vunpack.c.l.b16 %v119
    %v141 = vunpack.c.l.b16 %v120
    %v142 = vpack.c.b16 %v136, %v135
    %v143 = vpack.c.b16 %v138, %v137
    %v144 = vpack.c.b16 %v140, %v139
    %v145 = vpack.c.b16 %v141, %v141
    %vm149 = vcmask 408576
    %v151 = vsel %vm149, %v108, 0
    %v154 = vsel %vm149, %v109, 0
    %v157 = vsel %vm149, %v110, 0
    %v160 = vsel %vm149, %v111, 0
    %v163 = vsel %vm149, %v112, 0
    %v166 = vsel %vm149, %v113, 0
    %vm168 = vcmask 1040384
    %v170 = vsel %vm168, %v145, 0
    %172 = vmatprep.subr.bf16.mxu0 0
    %173 = vmatpush1.bf16.msra.mxu0 0
    %174 = vmatprep.subr.bf16.mxu0 0
    %175 = vmatpush1.bf16.msra.mxu0 0
    %176 = vmatprep.subr.bf16.mxu0 0
    %177 = vmatpush1.bf16.msra.mxu0 0
    %178 = vmatprep.subr.bf16.mxu0 0
    %179 = vmatpush1.bf16.msra.mxu0 0
    %180 = vmatprep.subr.bf16.mxu0 0
    %181 = vmatpush1.bf16.msra.mxu0 %v170
    %182 = vmatprep.subr.bf16.mxu0 0
    %183 = vmatpush1.bf16.msra.mxu0 %v144
    %184 = vmatprep.subr.bf16.mxu0 0
    %185 = vmatpush1.bf16.msra.mxu0 %v143
    %186 = vmatprep.subr.bf16.mxu0 0
    %187 = vmatpush1.bf16.msra.mxu0 %v142
    %188 = vmatprep.subr.bf16.mxu0 0
    %189 = vmatpush2.bf16.msra.mxu0 0
    %190 = vmatprep.subr.bf16.mxu0 0
    %191 = vmatpush2.bf16.msra.mxu0 0
    %192 = vmatprep.subr.bf16.mxu0 0
    %193 = vmatpush2.bf16.msra.mxu0 0
    %194 = vmatprep.subr.bf16.mxu0 0
    %195 = vmatpush2.bf16.msra.mxu0 0
    %196 = vmatprep.subr.bf16.mxu0 0
    %197 = vmatpush2.bf16.msra.mxu0 0
    %198 = vmatprep.subr.bf16.mxu0 0
    %199 = vmatpush2.bf16.msra.mxu0 0
    %200 = vmatprep.subr.bf16.mxu0 0
    %201 = vmatpush2.bf16.msra.mxu0 0
    %202 = vmatprep.subr.bf16.mxu0 0
    %203 = vmatpush2.bf16.msra.mxu0 0
    %204 = vmatprep.mubr.bf16.mxu0 0
    %205 = vmatmul.mubr.bf16.gmra.mxu0 %v151
    %v206 = vpop.f32.mrf.mxu0
    %v207 = vadd.f32 %v126, %v206
    %v208 = vpop.f32.mrf.mxu0
    %v209 = vpop.f32.mrf.mxu0
    %v210 = vadd.f32 %v126, %v209
    %v211 = vpop.f32.mrf.mxu0
    %212 = vmatprep.mubr.bf16.mxu0 0
    %213 = vmatmul.mubr.bf16.gmra.mxu0 %v154
    %v214 = vpop.f32.mrf.mxu0
    %v215 = vadd.f32 %v126, %v214
    %v216 = vpop.f32.mrf.mxu0
    %v217 = vpop.f32.mrf.mxu0
    %v218 = vadd.f32 %v126, %v217
    %v219 = vpop.f32.mrf.mxu0
    %220 = vmatprep.mubr.bf16.mxu0 0
    %221 = vmatmul.mubr.bf16.gmra.mxu0 %v157
    %v222 = vpop.f32.mrf.mxu0
    %v223 = vadd.f32 %v126, %v222
    %v224 = vpop.f32.mrf.mxu0
    %v225 = vpop.f32.mrf.mxu0
    %v226 = vadd.f32 %v126, %v225
    %v227 = vpop.f32.mrf.mxu0
    %228 = vmatprep.mubr.bf16.mxu0 0
    %229 = vmatmul.mubr.bf16.gmra.mxu0 %v160
    %v230 = vpop.f32.mrf.mxu0
    %v231 = vadd.f32 %v126, %v230
    %v232 = vpop.f32.mrf.mxu0
    %v233 = vpop.f32.mrf.mxu0
    %v234 = vadd.f32 %v126, %v233
    %v235 = vpop.f32.mrf.mxu0
    %236 = vmatprep.mubr.bf16.mxu0 0
    %237 = vmatmul.mubr.bf16.gmra.mxu0 %v163
    %v238 = vpop.f32.mrf.mxu0
    %v239 = vadd.f32 %v126, %v238
    %v240 = vpop.f32.mrf.mxu0
    %v241 = vpop.f32.mrf.mxu0
    %v242 = vadd.f32 %v126, %v241
    %v243 = vpop.f32.mrf.mxu0
    %244 = vmatprep.mubr.bf16.mxu0 0
    %245 = vmatmul.mubr.bf16.gmra.mxu0 %v166
    %v246 = vpop.f32.mrf.mxu0
    %v247 = vadd.f32 %v126, %v246
    %v248 = vpop.f32.mrf.mxu0
    %v249 = vpop.f32.mrf.mxu0
    %v250 = vadd.f32 %v126, %v249
    %v251 = vpop.f32.mrf.mxu0
    %252 = vdwg.mxu0
    %v253 = vld [vmem:[%s3] sm:$0xff]
    %v254 = vld [vmem:[%s3 + $0x8] sm:$0xff]
    %v255 = vld [vmem:[%s3 + $0x10] sm:$0xff]
    %v256 = vld [vmem:[%s4] sm:$0x1]
    %268 = vrot.lane.b32.xlu0 %v210, 120
    %v269 = vpop.permute.xlu0 %268
    %270 = vrot.lane.b32.xlu0 %v215, 120
    %v271 = vpop.permute.xlu0 %270
    %272 = vrot.lane.b32.xlu0 %v218, 120
    %v273 = vpop.permute.xlu0 %272
    %274 = vrot.lane.b32.xlu0 %v223, 120
    %v275 = vpop.permute.xlu0 %274
    %276 = vrot.lane.b32.xlu0 %v226, 120
    %v277 = vpop.permute.xlu0 %276
    %278 = vrot.lane.b32.xlu0 %v231, 120
    %v279 = vpop.permute.xlu0 %278
    %280 = vrot.lane.b32.xlu0 %v234, 120
    %v281 = vpop.permute.xlu0 %280
    %282 = vrot.lane.b32.xlu0 %v239, 120
    %v283 = vpop.permute.xlu0 %282
    %284 = vrot.lane.b32.xlu0 %v242, 120
    %v285 = vpop.permute.xlu0 %284
    %286 = vrot.lane.b32.xlu0 %v247, 120
    %v287 = vpop.permute.xlu0 %286
    %288 = vrot.lane.b32.xlu0 %v250, 120
    %v289 = vpop.permute.xlu0 %288
    %v301 = vadd.f32 %v207, %v269
    %v302 = vadd.f32 %v210, %v271
    %v303 = vadd.f32 %v215, %v273
    %v304 = vadd.f32 %v218, %v275
    %v305 = vadd.f32 %v223, %v277
    %v306 = vadd.f32 %v226, %v279
    %v307 = vadd.f32 %v231, %v281
    %v308 = vadd.f32 %v234, %v283
    %v309 = vadd.f32 %v239, %v285
    %v310 = vadd.f32 %v242, %v287
    %v311 = vadd.f32 %v247, %v289
    %v312 = vmax.f32 %v301, 0.0
    %v313 = vmax.f32 %v302, 0.0
    %v314 = vmax.f32 %v303, 0.0
    %v315 = vmax.f32 %v304, 0.0
    %v316 = vmax.f32 %v305, 0.0
    %v317 = vmax.f32 %v306, 0.0
    %v318 = vmax.f32 %v307, 0.0
    %v319 = vmax.f32 %v308, 0.0
    %v320 = vmax.f32 %v309, 0.0
    %v321 = vmax.f32 %v310, 0.0
    %v322 = vmax.f32 %v311, 0.0
    %v323 = vmax.f32 %v312, %v317
    %v324 = vmax.f32 %v313, %v318
    %v325 = vmax.f32 %v314, %v319
    %v326 = vmax.f32 %v315, %v320
    %v327 = vmax.f32 %v316, %v321
    %v328 = vmax.f32 %v317, %v322
    %v329 = vmax.f32 %v323, %v326
    %v330 = vmax.f32 %v324, %v327
    %v331 = vmax.f32 %v325, %v328
    %v332 = vmax.f32 %v329, %v330
    %v333 = vmax.f32 %v330, %v331
    %v334 = vmax.f32 %v332, %v333
    %vm335 = vcmask 64512
    %v337 = vsel %vm335, %v334, 0
    %339 = vmatprep.subr.mxu0 0.0
    %340 = vmatpush1.msra.mxu0 0.0
    %341 = vmatprep.subr.mxu0 0.0
    %342 = vmatpush1.msra.mxu0 0.0
    %343 = vmatprep.subr.mxu0 0.0
    %344 = vmatpush1.msra.mxu0 0.0
    %345 = vmatprep.subr.mxu0 0.0
    %346 = vmatpush1.msra.mxu0 0.0
    %347 = vmatprep.subr.mxu0 0.0
    %348 = vmatpush1.msra.mxu0 0.0
    %349 = vmatprep.subr.mxu0 0.0
    %350 = vmatpush1.msra.mxu0 0.0
    %351 = vmatprep.subr.mxu0 0.0
    %352 = vmatpush1.msra.mxu0 0.0
    %353 = vmatprep.subr.mxu0 0.0
    %354 = vmatpush1.msra.mxu0 0.0
    %355 = vmatprep.subr.mxu0 0.0
    %356 = vmatpush1.msra.mxu0 0.0
    %357 = vmatprep.subr.mxu0 0.0
    %358 = vmatpush1.msra.mxu0 0.0
    %359 = vmatprep.subr.mxu0 0.0
    %360 = vmatpush1.msra.mxu0 0.0
    %361 = vmatprep.subr.mxu0 0.0
    %362 = vmatpush1.msra.mxu0 0.0
    %363 = vmatprep.subr.mxu0 0.0
    %364 = vmatpush1.msra.mxu0 0.0
    %365 = vmatprep.subr.mxu0 0.0
    %366 = vmatpush1.msra.mxu0 0.0
    %367 = vmatprep.subr.mxu0 0.0
    %368 = vmatpush1.msra.mxu0 0.0
    %369 = vmatprep.subr.mxu0 0.0
    %370 = vmatpush1.msra.mxu0 %v253
    %371 = vmatprep.subr.mxu0 0.0
    %372 = vmatpush2.msra.mxu0 0.0
    %373 = vmatprep.subr.mxu0 0.0
    %374 = vmatpush2.msra.mxu0 0.0
    %375 = vmatprep.subr.mxu0 0.0
    %376 = vmatpush2.msra.mxu0 0.0
    %377 = vmatprep.subr.mxu0 0.0
    %378 = vmatpush2.msra.mxu0 0.0
    %379 = vmatprep.subr.mxu0 0.0
    %380 = vmatpush2.msra.mxu0 0.0
    %381 = vmatprep.subr.mxu0 0.0
    %382 = vmatpush2.msra.mxu0 0.0
    %383 = vmatprep.subr.mxu0 0.0
    %384 = vmatpush2.msra.mxu0 0.0
    %385 = vmatprep.subr.mxu0 0.0
    %386 = vmatpush2.msra.mxu0 0.0
    %387 = vmatprep.subr.mxu0 0.0
    %388 = vmatpush2.msra.mxu0 0.0
    %389 = vmatprep.subr.mxu0 0.0
    %390 = vmatpush2.msra.mxu0 0.0
    %391 = vmatprep.subr.mxu0 0.0
    %392 = vmatpush2.msra.mxu0 0.0
    %393 = vmatprep.subr.mxu0 0.0
    %394 = vmatpush2.msra.mxu0 0.0
    %395 = vmatprep.subr.mxu0 0.0
    %396 = vmatpush2.msra.mxu0 0.0
    %397 = vmatprep.subr.mxu0 0.0
    %398 = vmatpush2.msra.mxu0 0.0
    %399 = vmatprep.subr.mxu0 0.0
    %400 = vmatpush2.msra.mxu0 0.0
    %401 = vmatprep.subr.mxu0 0.0
    %402 = vmatpush2.msra.mxu0 0.0
    %403 = vmatprep.mubr.f32.mxu0 0.0
    %404 = vmatmul.mubr.f32.gmra.mxu0 %v337
    %v405 = vpop.f32.mrf.mxu0
    %v406 = vadd.f32 0.0, %v405
    %v407 = vpop.f32.mrf.mxu0
    %408 = vdwg.mxu0
    %v410 = vlaneseq
    %v411 = vshrl.u32 %v410, 7
    %v412 = vsub.s32 0, %v411
    %v413 = vrot.slane %v256, %v412
    %v415 = vadd.f32 %v413, %v406
    %416 = vrot.lane.b32.xlu0 %v215, 112
    %v417 = vpop.permute.xlu0 %416
    %418 = vrot.lane.b32.xlu0 %v218, 112
    %v419 = vpop.permute.xlu0 %418
    %420 = vrot.lane.b32.xlu0 %v223, 112
    %v421 = vpop.permute.xlu0 %420
    %422 = vrot.lane.b32.xlu0 %v226, 112
    %v423 = vpop.permute.xlu0 %422
    %424 = vrot.lane.b32.xlu0 %v231, 112
    %v425 = vpop.permute.xlu0 %424
    %426 = vrot.lane.b32.xlu0 %v234, 112
    %v427 = vpop.permute.xlu0 %426
    %428 = vrot.lane.b32.xlu0 %v239, 112
    %v429 = vpop.permute.xlu0 %428
    %430 = vrot.lane.b32.xlu0 %v242, 112
    %v431 = vpop.permute.xlu0 %430
    %432 = vrot.lane.b32.xlu0 %v247, 112
    %v433 = vpop.permute.xlu0 %432
    %434 = vrot.lane.b32.xlu0 %v250, 112
    %v435 = vpop.permute.xlu0 %434
    %v446 = vadd.f32 %v301, %v417
    %v447 = vadd.f32 %v302, %v419
    %v448 = vadd.f32 %v303, %v421
    %v449 = vadd.f32 %v304, %v423
    %v450 = vadd.f32 %v305, %v425
    %v451 = vadd.f32 %v306, %v427
    %v452 = vadd.f32 %v307, %v429
    %v453 = vadd.f32 %v308, %v431
    %v454 = vadd.f32 %v309, %v433
    %v455 = vadd.f32 %v310, %v435
    %v456 = vmax.f32 %v446, 0.0
    %v457 = vmax.f32 %v447, 0.0
    %v458 = vmax.f32 %v448, 0.0
    %v459 = vmax.f32 %v449, 0.0
    %v460 = vmax.f32 %v450, 0.0
    %v461 = vmax.f32 %v451, 0.0
    %v462 = vmax.f32 %v452, 0.0
    %v463 = vmax.f32 %v453, 0.0
    %v464 = vmax.f32 %v454, 0.0
    %v465 = vmax.f32 %v455, 0.0
    %v466 = vmax.f32 %v456, %v461
    %v467 = vmax.f32 %v457, %v462
    %v468 = vmax.f32 %v458, %v463
    %v469 = vmax.f32 %v459, %v464
    %v470 = vmax.f32 %v460, %v465
    %v471 = vmax.f32 %v466, %v468
    %v472 = vmax.f32 %v467, %v469
    %v473 = vmax.f32 %v468, %v470
    %v474 = vmax.f32 %v471, %v472
    %v475 = vmax.f32 %v472, %v473
    %v476 = vmax.f32 %v474, %v475
    %478 = vrot.lane.b32.xlu0 %v476, 112
    %v479 = vpop.permute.xlu0 %478
    %v480 = vsel %vm335, %v479, 0
    %482 = vmatprep.subr.mxu0 0.0
    %483 = vmatpush1.msra.mxu0 0.0
    %484 = vmatprep.subr.mxu0 0.0
    %485 = vmatpush1.msra.mxu0 0.0
    %486 = vmatprep.subr.mxu0 0.0
    %487 = vmatpush1.msra.mxu0 0.0
    %488 = vmatprep.subr.mxu0 0.0
    %489 = vmatpush1.msra.mxu0 0.0
    %490 = vmatprep.subr.mxu0 0.0
    %491 = vmatpush1.msra.mxu0 0.0
    %492 = vmatprep.subr.mxu0 0.0
    %493 = vmatpush1.msra.mxu0 0.0
    %494 = vmatprep.subr.mxu0 0.0
    %495 = vmatpush1.msra.mxu0 0.0
    %496 = vmatprep.subr.mxu0 0.0
    %497 = vmatpush1.msra.mxu0 0.0
    %498 = vmatprep.subr.mxu0 0.0
    %499 = vmatpush1.msra.mxu0 0.0
    %500 = vmatprep.subr.mxu0 0.0
    %501 = vmatpush1.msra.mxu0 0.0
    %502 = vmatprep.subr.mxu0 0.0
    %503 = vmatpush1.msra.mxu0 0.0
    %504 = vmatprep.subr.mxu0 0.0
    %505 = vmatpush1.msra.mxu0 0.0
    %506 = vmatprep.subr.mxu0 0.0
    %507 = vmatpush1.msra.mxu0 0.0
    %508 = vmatprep.subr.mxu0 0.0
    %509 = vmatpush1.msra.mxu0 0.0
    %510 = vmatprep.subr.mxu0 0.0
    %511 = vmatpush1.msra.mxu0 0.0
    %512 = vmatprep.subr.mxu0 0.0
    %513 = vmatpush1.msra.mxu0 %v254
    %514 = vmatprep.subr.mxu0 0.0
    %515 = vmatpush2.msra.mxu0 0.0
    %516 = vmatprep.subr.mxu0 0.0
    %517 = vmatpush2.msra.mxu0 0.0
    %518 = vmatprep.subr.mxu0 0.0
    %519 = vmatpush2.msra.mxu0 0.0
    %520 = vmatprep.subr.mxu0 0.0
    %521 = vmatpush2.msra.mxu0 0.0
    %522 = vmatprep.subr.mxu0 0.0
    %523 = vmatpush2.msra.mxu0 0.0
    %524 = vmatprep.subr.mxu0 0.0
    %525 = vmatpush2.msra.mxu0 0.0
    %526 = vmatprep.subr.mxu0 0.0
    %527 = vmatpush2.msra.mxu0 0.0
    %528 = vmatprep.subr.mxu0 0.0
    %529 = vmatpush2.msra.mxu0 0.0
    %530 = vmatprep.subr.mxu0 0.0
    %531 = vmatpush2.msra.mxu0 0.0
    %532 = vmatprep.subr.mxu0 0.0
    %533 = vmatpush2.msra.mxu0 0.0
    %534 = vmatprep.subr.mxu0 0.0
    %535 = vmatpush2.msra.mxu0 0.0
    %536 = vmatprep.subr.mxu0 0.0
    %537 = vmatpush2.msra.mxu0 0.0
    %538 = vmatprep.subr.mxu0 0.0
    %539 = vmatpush2.msra.mxu0 0.0
    %540 = vmatprep.subr.mxu0 0.0
    %541 = vmatpush2.msra.mxu0 0.0
    %542 = vmatprep.subr.mxu0 0.0
    %543 = vmatpush2.msra.mxu0 0.0
    %544 = vmatprep.subr.mxu0 0.0
    %545 = vmatpush2.msra.mxu0 0.0
    %546 = vmatprep.mubr.f32.mxu0 0.0
    %547 = vmatmul.mubr.f32.gmra.mxu0 %v480
    %v548 = vpop.f32.mrf.mxu0
    %v549 = vadd.f32 0.0, %v548
    %v550 = vpop.f32.mrf.mxu0
    %551 = vdwg.mxu0
    %v552 = vadd.f32 %v415, %v549
    %553 = vrot.lane.b32.xlu0 %v218, 104
    %v554 = vpop.permute.xlu0 %553
    %555 = vrot.lane.b32.xlu0 %v223, 104
    %v556 = vpop.permute.xlu0 %555
    %557 = vrot.lane.b32.xlu0 %v226, 104
    %v558 = vpop.permute.xlu0 %557
    %559 = vrot.lane.b32.xlu0 %v231, 104
    %v560 = vpop.permute.xlu0 %559
    %561 = vrot.lane.b32.xlu0 %v234, 104
    %v562 = vpop.permute.xlu0 %561
    %563 = vrot.lane.b32.xlu0 %v239, 104
    %v564 = vpop.permute.xlu0 %563
    %565 = vrot.lane.b32.xlu0 %v242, 104
    %v566 = vpop.permute.xlu0 %565
    %567 = vrot.lane.b32.xlu0 %v247, 104
    %v568 = vpop.permute.xlu0 %567
    %569 = vrot.lane.b32.xlu0 %v250, 104
    %v570 = vpop.permute.xlu0 %569
    %v580 = vadd.f32 %v446, %v554
    %v581 = vadd.f32 %v447, %v556
    %v582 = vadd.f32 %v448, %v558
    %v583 = vadd.f32 %v449, %v560
    %v584 = vadd.f32 %v450, %v562
    %v585 = vadd.f32 %v451, %v564
    %v586 = vadd.f32 %v452, %v566
    %v587 = vadd.f32 %v453, %v568
    %v588 = vadd.f32 %v454, %v570
    %v589 = vmax.f32 %v580, 0.0
    %v590 = vmax.f32 %v581, 0.0
    %v591 = vmax.f32 %v582, 0.0
    %v592 = vmax.f32 %v583, 0.0
    %v593 = vmax.f32 %v584, 0.0
    %v594 = vmax.f32 %v585, 0.0
    %v595 = vmax.f32 %v586, 0.0
    %v596 = vmax.f32 %v587, 0.0
    %v597 = vmax.f32 %v588, 0.0
    %v598 = vmax.f32 %v589, %v593
    %v599 = vmax.f32 %v590, %v594
    %v600 = vmax.f32 %v591, %v595
    %v601 = vmax.f32 %v592, %v596
    %v602 = vmax.f32 %v593, %v597
    %v603 = vmax.f32 %v598, %v600
    %v604 = vmax.f32 %v599, %v601
    %v605 = vmax.f32 %v600, %v602
    %v606 = vmax.f32 %v603, %v604
    %v607 = vmax.f32 %v604, %v605
    %v608 = vmax.f32 %v606, %v607
    %610 = vrot.lane.b32.xlu0 %v608, 88
    %v611 = vpop.permute.xlu0 %610
    %v612 = vsel %vm335, %v611, 0
    %614 = vmatprep.subr.mxu0 0.0
    %615 = vmatpush1.msra.mxu0 0.0
    %616 = vmatprep.subr.mxu0 0.0
    %617 = vmatpush1.msra.mxu0 0.0
    %618 = vmatprep.subr.mxu0 0.0
    %619 = vmatpush1.msra.mxu0 0.0
    %620 = vmatprep.subr.mxu0 0.0
    %621 = vmatpush1.msra.mxu0 0.0
    %622 = vmatprep.subr.mxu0 0.0
    %623 = vmatpush1.msra.mxu0 0.0
    %624 = vmatprep.subr.mxu0 0.0
    %625 = vmatpush1.msra.mxu0 0.0
    %626 = vmatprep.subr.mxu0 0.0
    %627 = vmatpush1.msra.mxu0 0.0
    %628 = vmatprep.subr.mxu0 0.0
    %629 = vmatpush1.msra.mxu0 0.0
    %630 = vmatprep.subr.mxu0 0.0
    %631 = vmatpush1.msra.mxu0 0.0
    %632 = vmatprep.subr.mxu0 0.0
    %633 = vmatpush1.msra.mxu0 0.0
    %634 = vmatprep.subr.mxu0 0.0
    %635 = vmatpush1.msra.mxu0 0.0
    %636 = vmatprep.subr.mxu0 0.0
    %637 = vmatpush1.msra.mxu0 0.0
    %638 = vmatprep.subr.mxu0 0.0
    %639 = vmatpush1.msra.mxu0 0.0
    %640 = vmatprep.subr.mxu0 0.0
    %641 = vmatpush1.msra.mxu0 0.0
    %642 = vmatprep.subr.mxu0 0.0
    %643 = vmatpush1.msra.mxu0 0.0
    %644 = vmatprep.subr.mxu0 0.0
    %645 = vmatpush1.msra.mxu0 %v255
    %646 = vmatprep.subr.mxu0 0.0
    %647 = vmatpush2.msra.mxu0 0.0
    %648 = vmatprep.subr.mxu0 0.0
    %649 = vmatpush2.msra.mxu0 0.0
    %650 = vmatprep.subr.mxu0 0.0
    %651 = vmatpush2.msra.mxu0 0.0
    %652 = vmatprep.subr.mxu0 0.0
    %653 = vmatpush2.msra.mxu0 0.0
    %654 = vmatprep.subr.mxu0 0.0
    %655 = vmatpush2.msra.mxu0 0.0
    %656 = vmatprep.subr.mxu0 0.0
    %657 = vmatpush2.msra.mxu0 0.0
    %658 = vmatprep.subr.mxu0 0.0
    %659 = vmatpush2.msra.mxu0 0.0
    %660 = vmatprep.subr.mxu0 0.0
    %661 = vmatpush2.msra.mxu0 0.0
    %662 = vmatprep.subr.mxu0 0.0
    %663 = vmatpush2.msra.mxu0 0.0
    %664 = vmatprep.subr.mxu0 0.0
    %665 = vmatpush2.msra.mxu0 0.0
    %666 = vmatprep.subr.mxu0 0.0
    %667 = vmatpush2.msra.mxu0 0.0
    %668 = vmatprep.subr.mxu0 0.0
    %669 = vmatpush2.msra.mxu0 0.0
    %670 = vmatprep.subr.mxu0 0.0
    %671 = vmatpush2.msra.mxu0 0.0
    %672 = vmatprep.subr.mxu0 0.0
    %673 = vmatpush2.msra.mxu0 0.0
    %674 = vmatprep.subr.mxu0 0.0
    %675 = vmatpush2.msra.mxu0 0.0
    %676 = vmatprep.subr.mxu0 0.0
    %677 = vmatpush2.msra.mxu0 0.0
    %678 = vmatprep.mubr.f32.mxu0 0.0
    %679 = vmatmul.mubr.f32.gmra.mxu0 %v612
    %v680 = vpop.f32.mrf.mxu0
    %v681 = vadd.f32 0.0, %v680
    %v682 = vpop.f32.mrf.mxu0
    %683 = vdwg.mxu0
    %v684 = vadd.f32 %v552, %v681
    %vm685 = vcmask 39936
    %v686 = vsel %vm685, %v684, -inf
    %687 = vmax.xlane.f32.xlu0 %v686
    %v688 = vpop.xlane.xlu0 %687
    %v689 = vsub.f32 %v684, %v688
    %v690 = vmul.f32 %v689, 1.442695
    %v691 = vpow.pop %v690
    %v692 = vsel %vm685, %v691, 0.0
    %693 = vadd.xlane.f32.xlu0 %v692
    %v694 = vpop.xlane.xlu0 %693
    %v695 = vlog2.pop %v694
    %v696 = vmul.f32 %v695, 0.6931472
    %v697 = vsub.f32 %v689, %v696
    %698 = vst.msk [vmem:[#allocation2] sm:$0xff] %vm685, %v697
    // Predicated region
    $region22: #{tpu_custom_call.1} parent=1 // pred_check
      _
    $region23: #{tpu_custom_call.1} parent=1 // pred_check_branch
      %700 = sbr.rel (0) target = $region25
    $region24: #{tpu_custom_call.1} parent=1 // pred_region
      %s702 = ssub.s32 128, 128
      %703 = vsyncadd [#allocation3], %s702
      %s705 = sshll.u32 [#allocation2], 4
      %s706 = int_to_ptr.vmem [resolvable:$true] %s705
      %708 = dma.vmem_to_hbm [thread:$0]  %s706, 128, %s5, [#allocation3]
    $region25: #{tpu_custom_call.1} parent=1 // pred_fallthru
      _
    // Predicated region
    $region26: #{tpu_custom_call.1} parent=1 // pred_check
      _
    $region27: #{tpu_custom_call.1} parent=1 // pred_check_branch
      %710 = sbr.rel (0) target = $region29
    $region28: #{tpu_custom_call.1} parent=1 // pred_region
      %711 = dma.done [#allocation3], 128
    $region29: #{tpu_custom_call.1} parent=1 // pred_fallthru
      _
    %712 = vsyncpa [#allocation3], 1

</llo_original>
